<compile_context>
chip_gen: v7x
topology: tpu7x:2x2x1
jax: 0.10.0
libtpu: 0.0.40
codegen_flags: <defaults>
</compile_context>

<pallas_src>
import math

import jax
import jax.numpy as jnp
from jax.experimental import pallas as pl
from jax.experimental.pallas import tpu as pltpu


def _linear_kernel(x_ref, w_ref, o_ref):
    # x_ref: (TILE_N, G*C_in)   bf16 -- node rows, G lm rows' channels side by side
    # w_ref: (G*C_in, G*C_out)  bf16 -- block-diagonal per-group weight
    # o_ref: (TILE_N, G*C_out)  bf16
    o_ref[...] = jnp.dot(
        x_ref[...], w_ref[...], preferred_element_type=jnp.float32
    ).astype(o_ref.dtype)


def _lmap(n_l):
    return jnp.asarray(
        [l for l in range(n_l) for _ in range(2 * l + 1)], dtype=jnp.int32
    )


def equivariant_linear(x, weights, *, max_tile_n=4096, compute_dtype=jnp.bfloat16):
    """x: [N, (lmax+1)^2, C_in]; weights: [lmax+1, C_in, C_out] -> [N, (lmax+1)^2, C_out].

    Output is returned in `compute_dtype` (bf16 by default, matching the wmma
    reference kernel's reduced-precision compute path).
    """
    n_nodes, n_lm, c_in = x.shape
    n_l, c_in_w, c_out = weights.shape
    assert c_in == c_in_w
    assert n_lm == n_l * n_l, "expect (lmax+1)^2 spherical rows"

    # e3nn path weight for a single-instruction-per-l Linear: 1/sqrt(fan_in).
    # Fold it into the weight stack once (O(KB)) and expand to one matrix per
    # lm row so the grouped weight is a plain leading-dim lookup.
    scale = 1.0 / math.sqrt(c_in)
    w_lm = (weights.astype(jnp.float32) * scale)[_lmap(n_l)]  # [n_lm, C_in, C_out] f32

    # Group size: pack G lm rows per grid step so the output block is 128 lanes
    # wide (lane-dense stores are the biggest measured lever on TPU).
    if c_out % 128 == 0:
        group = 1
    elif 128 % c_out == 0:
        group = 128 // c_out
    else:
        group = 1  # TODO(synk): non-power-of-two C_out falls back to masked stores.
    while n_lm % group:
        group //= 2
    n_groups = n_lm // group
    gk = group * c_in   # per-group K
    gn = group * c_out  # per-group N (== 128 for the cuda_mace shapes)

    # Block-diagonal grouped weights: w_bd[g, i*C_in:(i+1)*C_in, i*C_out:(i+1)*C_out]
    # = w_lm[g*G + i].  Built in f32 (exact), cast once to bf16.
    w_g = w_lm.reshape(n_groups, group, c_in, c_out)
    eye = jnp.eye(group, dtype=jnp.float32)
    w_bd = (
        jnp.einsum("ngij,gh->ngihj", w_g, eye)
        .reshape(n_groups, gk, gn)
        .astype(compute_dtype)
    )

    # Flatten the (lm, channel) dims -> contiguous lane axis; free reshapes.
    x_flat = x.reshape(n_nodes, n_lm * c_in).astype(compute_dtype)

    # Node tile: as large as possible (fewer 0.35 us grid steps, >=1 MiB DMAs).
    tile_n = n_nodes if n_nodes <= max_tile_n else max_tile_n
    grid = (pl.cdiv(n_nodes, tile_n), n_groups)  # node tiles OUTER -> megacore on nodes

    out_flat = pl.pallas_call(
        _linear_kernel,
        out_shape=jax.ShapeDtypeStruct((n_nodes, n_lm * c_out), compute_dtype),
        grid=grid,
        in_specs=[
            # x: (tile_n, G*C_in) slab — lane-dense, contiguous per node row.
            pl.BlockSpec((tile_n, gk), lambda nt, g: (nt, g)),
            # per-group block-diagonal weight (leading group dim squeezed).
            pl.BlockSpec((None, gk, gn), lambda nt, g: (g, 0, 0)),
        ],
        out_specs=pl.BlockSpec((tile_n, gn), lambda nt, g: (nt, g)),
        compiler_params=pltpu.CompilerParams(
            dimension_semantics=("parallel", "parallel"),
        ),
    )(x_flat, w_bd)

    return out_flat.reshape(n_nodes, n_lm, c_out)


def _reference(x, weights, compute_dtype=jnp.bfloat16):
    """f32 reference on the same bf16-quantized inputs the kernel consumes."""
    n_nodes, n_lm, c_in = x.shape
    n_l = weights.shape[0]
    scale = 1.0 / math.sqrt(c_in)
    w_per_lm = (
        (weights.astype(jnp.float32) * scale)[_lmap(n_l)]
        .astype(compute_dtype)
        .astype(jnp.float32)
    )
    x32 = x.astype(compute_dtype).astype(jnp.float32)
    return jnp.einsum("nlc,lcd->nld", x32, w_per_lm)


if __name__ == "__main__":
    # Small cuda_mace-like shapes: lmax=3 -> 16 spherical rows, 32 channels.
    n_nodes, lmax, c_in, c_out = 8, 3, 32, 32
    n_lm = (lmax + 1) ** 2

    key = jax.random.PRNGKey(0)
    kx, kw = jax.random.split(key)
    x = jax.random.normal(kx, (n_nodes, n_lm, c_in), dtype=jnp.float32)
    # Stacked per-l weights (deterministic stand-in for the unpacked e3nn flat weights).
    weights = jax.random.normal(kw, (lmax + 1, c_in, c_out), dtype=jnp.float32)

    out = equivariant_linear(x, weights)
    jax.block_until_ready(out)
    ref = _reference(x, weights)
    assert out.shape == (n_nodes, n_lm, c_out)
    assert jnp.allclose(out.astype(jnp.float32), ref, atol=2e-2, rtol=2e-2)

    # Exercise the multi-tile + ragged-last-tile node path (review concern).
    n_big = 300  # 3 tiles of 128 with a partial last tile
    xb = jax.random.normal(jax.random.PRNGKey(1), (n_big, n_lm, c_in), dtype=jnp.float32)
    outb = equivariant_linear(xb, weights, max_tile_n=128)
    jax.block_until_ready(outb)
    refb = _reference(xb, weights)
    assert outb.shape == (n_big, n_lm, c_out)
    assert jnp.allclose(outb.astype(jnp.float32), refb, atol=2e-2, rtol=2e-2)

    print("KERNEL_OK")
</pallas_src>

<mosaic_0001>
module attributes {stable_mosaic.version = 11 : i64} {
  func.func @_linear_kernel(%arg0: i32, %arg1: i32, %arg2: memref<8x128xbf16, #tpu.memory_space<vmem>>, %arg3: memref<1x128x128xbf16, #tpu.memory_space<vmem>>, %arg4: memref<8x128xbf16, #tpu.memory_space<vmem>>) attributes {dimension_semantics = [#tpu.dimension_semantics<parallel>, #tpu.dimension_semantics<parallel>], iteration_bounds = array<i64: 1, 4>, scalar_prefetch = 0 : i64, scratch_operands = 0 : i64, tpu.core_type = #tpu.core_type<tc>, window_params = [{transform_indices = @transform_0, window_bounds = array<i64: 8, 128>}, {transform_indices = @transform_1, window_bounds = array<i64: 1, 128, 128>}, {transform_indices = @transform_2, window_bounds = array<i64: 8, 128>}]} {
    %c0 = arith.constant 0 : index
    %c0_0 = arith.constant 0 : index
    %0 = vector.load %arg2[%c0, %c0_0] : memref<8x128xbf16, #tpu.memory_space<vmem>>, vector<8x128xbf16>
    %c0_1 = arith.constant 0 : index
    %c0_2 = arith.constant 0 : index
    %c0_3 = arith.constant 0 : index
    %1 = vector.load %arg3[%c0_1, %c0_2, %c0_3] : memref<1x128x128xbf16, #tpu.memory_space<vmem>>, vector<1x128x128xbf16>
    %2 = vector.shape_cast %1 : vector<1x128x128xbf16> to vector<128x128xbf16>
    %cst = arith.constant dense<0.000000e+00> : vector<8x128xf32>
    %3 = tpu.matmul %0, %2, %cst {dimension_numbers = #tpu.dot_dimension_numbers<[1], [0], [0], [1], [0, 0, 1, 1], [], []>} : vector<8x128xbf16>, vector<128x128xbf16>, vector<8x128xf32> -> vector<8x128xf32>
    %4 = arith.truncf %3 : vector<8x128xf32> to vector<8x128xbf16>
    %c0_4 = arith.constant 0 : index
    %c0_5 = arith.constant 0 : index
    %5 = vector.load %arg4[%c0_4, %c0_5] : memref<8x128xbf16, #tpu.memory_space<vmem>>, vector<8x128xbf16>
    tpu.vector_store %arg4[%c0_4, %c0_5], %4 {strides = array<i32>} : memref<8x128xbf16, #tpu.memory_space<vmem>>, vector<8x128xbf16>,
    return
  }
  func.func @transform_0(%arg0: i32, %arg1: i32) -> (i32, i32) {
    %c0_i32 = arith.constant 0 : i32
    return %arg0, %arg1 : i32, i32
  }
  func.func @transform_1(%arg0: i32, %arg1: i32) -> (i32, i32, i32) {
    %c0_i32 = arith.constant 0 : i32
    %c0_i32_0 = arith.constant 0 : i32
    %c0_i32_1 = arith.constant 0 : i32
    return %arg1, %c0_i32, %c0_i32_0 : i32, i32, i32
  }
  func.func @transform_2(%arg0: i32, %arg1: i32) -> (i32, i32) {
    %c0_i32 = arith.constant 0 : i32
    return %arg0, %arg1 : i32, i32
  }
}

</mosaic_0001>

<llo_original>
// kernel: tpu_custom_call.1
$region0: #{tpu_custom_call.1}
  #allocation0 [shape = 'u32[]', space=smem, size = 0x4, offset = 0x4, fixed_abs, tag = 'smem constant byte address 0x4 - core index']
  #allocation1 [shape = 'u32[144,128]{1,0:T(1,128)}', space=vmem, size = 0x12000, scoped, tag = 'internal scratch']
  %s0 = inlined_call_operand.hbm [shape: bf16[8,512], index: 0, kind: input, shape index: {}]
  %s1 = inlined_call_operand.hbm [shape: bf16[4,128,128], index: 1, kind: input, shape index: {}]
  %s2 = inlined_call_operand.hbm [shape: bf16[8,512], index: 2, kind: output, shape index: {}]
  %s3 = sld [smem:[#allocation0]]
  $region49: #{tpu_custom_call.1} parent=0
    _
  %s5 = ssub.s32 1, %s3
  %s6 = scalar_select 0, %s5, %s3
  $region1: #{tpu_custom_call.1} parent=0
    #allocation2 [shape = 'u8[4096]{0}', space=vmem, size = 0x1000, scoped, tag = 'input window, operand 0']
    #allocation3 [shape = 's32[2]{0}', space=sflag, size = 0x8, scoped, tag = 'scoped memory for tpu_custom_call.1']
    #allocation4 [shape = 's32[2]{0}', space=sflag, size = 0x8, scoped, tag = 'scoped memory for tpu_custom_call.1']
    #allocation5 [shape = 'u8[65536]{0}', space=vmem, size = 0x10000, scoped, tag = 'input window, operand 1']
    #allocation6 [shape = 's32[2]{0}', space=sflag, size = 0x8, scoped, tag = 'scoped memory for tpu_custom_call.1']
    #allocation7 [shape = 'u8[4096]{0}', space=vmem, size = 0x1000, scoped, tag = 'output window, operand 0']
    %7 = vsyncpa [#allocation3], 0
    %s8 = scalar_lea.sflag [#allocation3], 1
    %9 = vsyncpa %s8, 0
    %10 = vsyncpa [#allocation6], 0
    %s11 = scalar_lea.sflag [#allocation6], 1
    %12 = vsyncpa %s11, 0
    %13 = vsyncpa [#allocation4], 0
    %s14 = scalar_lea.sflag [#allocation4], 1
    %15 = vsyncpa %s14, 0
    loop: start=0, step=1, limit=6
    $region2: #{tpu_custom_call.1} parent=1 // loop_pre_header
      _
    $region3: #{tpu_custom_call.1} parent=1 // loop_header
      %s17 = sphi 0, %s21
      %p18 = scmp.ge.s32.totalorder %s17, 6
      %s24 = sphi 0, %s36
      %s25 = sphi 0, %s32
      %s26 = sphi 0, %s24
      %s27 = sphi 0, %s25
      %s28 = sphi 0, %s26
      %s29 = sphi 0, %s27
      %s41 = sphi 0, %s43
      %s44 = sphi 0, %s41
      %s45 = sphi 0, %s44
      %s61 = sphi 0, %s45
      %s67 = sphi 0, %s69
      %s70 = sphi 0, %s67
      %s71 = sphi 0, %s70
      %s87 = sphi 0, %s71
      %s95 = sphi 0, %s97
      %s98 = sphi 0, %s95
      %s99 = sphi 0, %s98
      %s115 = sphi 0, %s99
    $region4: #{tpu_custom_call.1} parent=1 // loop_header_branch
      %20 = sbr.rel (%p18) target = $region8
    $region5: #{tpu_custom_call.1} parent=1 // loop_body
      %s22 = ssub.s32 %s17, 1
      %s23 = ssub.s32 %s17, 2
      %s30 = sadd.s32 1, %s25
      %p31 = scmp.ge.s32.totalorder %s30, 4
      %s32 = scalar_select %p31, 0, %s30
      %s33 = sadd.s32 1, %s24
      %s34 = scalar_select %p31, %s33, %s24
      %p35 = scmp.ge.s32.totalorder %s34, 1
      %s36 = scalar_select %p35, 0, %s34
      %s37 = ssub.s32 %s24, %s36
      %s38 = ssub.s32 %s25, %s32
      %s39 = sor.u32 %s37, %s38
      %p40 = scmp.eq.s32.totalorder %s39, 0
      %s42 = sadd.s32 %s41, 1
      %s43 = scalar_select %p40, %s41, %s42
      %p46 = pneg %p40
      %p47 = scmp.eq.s32.totalorder %s17, 3
      %p48 = por %p46, %p47
      %p49 = scmp.ne.s32.totalorder %s41, %s44
      %p50 = scmp.eq.s32.totalorder %s17, 0
      %p51 = por %p49, %p50
      %p52 = scmp.ne.s32.totalorder %s41, %s44
      %p53 = scmp.eq.s32.totalorder %s22, 3
      %p54 = por %p52, %p53
      %p55 = scmp.ne.s32.totalorder %s44, %s45
      %p56 = scmp.eq.s32.totalorder %s22, 0
      %p57 = por %p55, %p56
      %p58 = scmp.ne.s32.totalorder %s44, %s45
      %p59 = scmp.eq.s32.totalorder %s23, 3
      %p60 = por %p58, %p59
      %p62 = scmp.ne.s32.totalorder %s45, %s61
      %p63 = scmp.eq.s32.totalorder %s23, 0
      %p64 = por %p62, %p63
      %s65 = ssub.s32 %s25, %s32
      %p66 = scmp.eq.s32.totalorder %s65, 0
      %s68 = sadd.s32 %s67, 1
      %s69 = scalar_select %p66, %s67, %s68
      %p72 = pneg %p66
      %p73 = scmp.eq.s32.totalorder %s17, 3
      %p74 = por %p72, %p73
      %p75 = scmp.ne.s32.totalorder %s67, %s70
      %p76 = scmp.eq.s32.totalorder %s17, 0
      %p77 = por %p75, %p76
      %p78 = scmp.ne.s32.totalorder %s67, %s70
      %p79 = scmp.eq.s32.totalorder %s22, 3
      %p80 = por %p78, %p79
      %p81 = scmp.ne.s32.totalorder %s70, %s71
      %p82 = scmp.eq.s32.totalorder %s22, 0
      %p83 = por %p81, %p82
      %p84 = scmp.ne.s32.totalorder %s70, %s71
      %p85 = scmp.eq.s32.totalorder %s23, 3
      %p86 = por %p84, %p85
      %p88 = scmp.ne.s32.totalorder %s71, %s87
      %p89 = scmp.eq.s32.totalorder %s23, 0
      %p90 = por %p88, %p89
      %s91 = ssub.s32 %s24, %s36
      %s92 = ssub.s32 %s25, %s32
      %s93 = sor.u32 %s91, %s92
      %p94 = scmp.eq.s32.totalorder %s93, 0
      %s96 = sadd.s32 %s95, 1
      %s97 = scalar_select %p94, %s95, %s96
      %p100 = pneg %p94
      %p101 = scmp.eq.s32.totalorder %s17, 3
      %p102 = por %p100, %p101
      %p103 = scmp.ne.s32.totalorder %s95, %s98
      %p104 = scmp.eq.s32.totalorder %s17, 0
      %p105 = por %p103, %p104
      %p106 = scmp.ne.s32.totalorder %s95, %s98
      %p107 = scmp.eq.s32.totalorder %s22, 3
      %p108 = por %p106, %p107
      %p109 = scmp.ne.s32.totalorder %s98, %s99
      %p110 = scmp.eq.s32.totalorder %s22, 0
      %p111 = por %p109, %p110
      %p112 = scmp.ne.s32.totalorder %s98, %s99
      %p113 = scmp.eq.s32.totalorder %s23, 3
      %p114 = por %p112, %p113
      %p116 = scmp.ne.s32.totalorder %s99, %s115
      %p117 = scmp.eq.s32.totalorder %s23, 0
      %p118 = por %p116, %p117
      %p119 = scmp.le.s32.totalorder 1, %s17
      %p120 = scmp.lt.s32.totalorder %s17, 5
      %p121 = pnand %p119, %p120
      %p122 = pneg %p121
      // Predicated region
      $region9: #{tpu_custom_call.1} parent=5 // pred_check
        _
      $region10: #{tpu_custom_call.1} parent=5 // pred_check_branch
        %124 = sbr.rel (%p121) target = $region12
      $region11: #{tpu_custom_call.1} parent=5 // pred_region
        %s125 = ssub.s32 %s17, 1
      $region12: #{tpu_custom_call.1} parent=5 // pred_fallthru
        _
      %p126 = scmp.lt.s32.totalorder %s17, 4
      // Predicated region
      $region13: #{tpu_custom_call.1} parent=5 // pred_check
        %p127 = pneg %p126
      $region14: #{tpu_custom_call.1} parent=5 // pred_check_branch
        %129 = sbr.rel (%p127) target = $region16
      $region15: #{tpu_custom_call.1} parent=5 // pred_region
        // Predicated region
        $region17: #{tpu_custom_call.1} parent=15 // pred_check
          %p130 = pneg %p51
        $region18: #{tpu_custom_call.1} parent=15 // pred_check_branch
          %132 = sbr.rel (%p130) target = $region20
        $region19: #{tpu_custom_call.1} parent=15 // pred_region
          %s133 = sand.u32 %s41, 1
          %s134 = scalar_lea.sflag [#allocation3], %s133
          %s135 = sand.u32 %s41, 1
          %s136 = smul.addr %s135, 4
          %s137 = scalar_lea.vmem [#allocation2], %s136
          %s139 = ssub.s32 64, 64
          %140 = vsyncadd %s134, %s139
          %s141 = smul.addr %s24, 4
          %s142 = sadd.s32 %s25, %s141
          %s143 = smul.addr %s142, 64
          %s144 = scalar_lea.hbm %s0, %s143
          %s146 = sshll.u32 %s137, 4
          %s147 = int_to_ptr.vmem [resolvable:$true] %s146
          %149 = dma.hbm_to_vmem [thread:$0]  %s144, 64, %s147, %s134
        $region20: #{tpu_custom_call.1} parent=15 // pred_fallthru
          _
        // Predicated region
        $region21: #{tpu_custom_call.1} parent=15 // pred_check
          %p150 = pneg %p77
        $region22: #{tpu_custom_call.1} parent=15 // pred_check_branch
          %152 = sbr.rel (%p150) target = $region24
        $region23: #{tpu_custom_call.1} parent=15 // pred_region
          %s153 = sand.u32 %s67, 1
          %s154 = scalar_lea.sflag [#allocation6], %s153
          %s155 = sand.u32 %s67, 1
          %s156 = smul.addr %s155, 64
          %s157 = scalar_lea.vmem [#allocation5], %s156
          %s159 = ssub.s32 1024, 1024
          %160 = vsyncadd %s154, %s159
          %s161 = smul.addr %s25, 16
          %s162 = smul.addr %s161, 64
          %s163 = scalar_lea.hbm %s1, %s162
          %s164 = sshll.u32 %s157, 4
          %s165 = int_to_ptr.vmem [resolvable:$true] %s164
          %170 = dma.hbm_to_vmem [thread:$0]  %s163, 1024, %s165, %s154, 64, 64, 4
        $region24: #{tpu_custom_call.1} parent=15 // pred_fallthru
          _
      $region16: #{tpu_custom_call.1} parent=5 // pred_fallthru
        _
      %p171 = scmp.le.s32.totalorder 1, %s17
      %p172 = scmp.lt.s32.totalorder %s17, 5
      %p173 = pnand %p171, %p172
      %p174 = pneg %p173
      // Predicated region
      $region25: #{tpu_custom_call.1} parent=5 // pred_check
        _
      $region26: #{tpu_custom_call.1} parent=5 // pred_check_branch
        %176 = sbr.rel (%p173) target = $region28
      $region27: #{tpu_custom_call.1} parent=5 // pred_region
        %s177 = ssub.s32 %s17, 1
        %s178 = sand.u32 %s44, 1
        %s179 = scalar_lea.sflag [#allocation3], %s178
        %s180 = sand.u32 %s44, 1
        %s181 = smul.addr %s180, 4
        %s182 = scalar_lea.vmem [#allocation2], %s181
        // Predicated region
        $region29: #{tpu_custom_call.1} parent=27 // pred_check
          %p183 = pneg %p57
        $region30: #{tpu_custom_call.1} parent=27 // pred_check_branch
          %185 = sbr.rel (%p183) target = $region32
        $region31: #{tpu_custom_call.1} parent=27 // pred_region
          %186 = dma.done %s179, 64
        $region32: #{tpu_custom_call.1} parent=27 // pred_fallthru
          _
        %s187 = sand.u32 %s70, 1
        %s188 = scalar_lea.sflag [#allocation6], %s187
        %s189 = sand.u32 %s70, 1
        %s190 = smul.addr %s189, 64
        %s191 = scalar_lea.vmem [#allocation5], %s190
        // Predicated region
        $region33: #{tpu_custom_call.1} parent=27 // pred_check
          %p192 = pneg %p83
        $region34: #{tpu_custom_call.1} parent=27 // pred_check_branch
          %194 = sbr.rel (%p192) target = $region36
        $region35: #{tpu_custom_call.1} parent=27 // pred_region
          %195 = dma.done %s188, 1024
        $region36: #{tpu_custom_call.1} parent=27 // pred_fallthru
          _
        %s196 = sand.u32 %s44, 1
        %s197 = scalar_lea.sflag [#allocation3], %s196
        %s198 = sand.u32 %s44, 1
        %s199 = smul.addr %s198, 4
        %s200 = scalar_lea.vmem [#allocation2], %s199
        %p201 = pneg %p57
        %p202 = pneg %p54
        %s203 = sand.u32 %s70, 1
        %s204 = scalar_lea.sflag [#allocation6], %s203
        %s205 = sand.u32 %s70, 1
        %s206 = smul.addr %s205, 64
        %s207 = scalar_lea.vmem [#allocation5], %s206
        %p208 = pneg %p83
        %p209 = pneg %p80
        %p210 = pneg %p111
        %p211 = pneg %p108
        %s212 = sand.u32 %s98, 1
        %s213 = scalar_lea.sflag [#allocation4], %s212
        %s214 = sand.u32 %s98, 1
        %s215 = smul.addr %s214, 4
        %s216 = scalar_lea.vmem [#allocation7], %s215
        %v218 = vld [vmem:[%s182] sm:$0xf]
        %v219 = vld [vmem:[%s191] sm:$0xf]
        %v220 = vld [vmem:[%s191 + $0x4] sm:$0xf]
        %v221 = vld [vmem:[%s191 + $0x8] sm:$0xf]
        %v222 = vld [vmem:[%s191 + $0xc] sm:$0xf]
        %v223 = vld [vmem:[%s191 + $0x10] sm:$0xf]
        %v224 = vld [vmem:[%s191 + $0x14] sm:$0xf]
        %v225 = vld [vmem:[%s191 + $0x18] sm:$0xf]
        %v226 = vld [vmem:[%s191 + $0x1c] sm:$0xf]
        %v227 = vld [vmem:[%s191 + $0x20] sm:$0xf]
        %v228 = vld [vmem:[%s191 + $0x24] sm:$0xf]
        %v229 = vld [vmem:[%s191 + $0x28] sm:$0xf]
        %v230 = vld [vmem:[%s191 + $0x2c] sm:$0xf]
        %v231 = vld [vmem:[%s191 + $0x30] sm:$0xf]
        %v232 = vld [vmem:[%s191 + $0x34] sm:$0xf]
        %v233 = vld [vmem:[%s191 + $0x38] sm:$0xf]
        %v234 = vld [vmem:[%s191 + $0x3c] sm:$0xf]
        %v251 = vunpack.c.l.b16 %v219
        %v252 = vunpack.c.l.b16 %v220
        %v253 = vunpack.c.l.b16 %v221
        %v254 = vunpack.c.l.b16 %v222
        %v255 = vunpack.c.l.b16 %v223
        %v256 = vunpack.c.l.b16 %v224
        %v257 = vunpack.c.l.b16 %v225
        %v258 = vunpack.c.l.b16 %v226
        %v259 = vunpack.c.l.b16 %v227
        %v260 = vunpack.c.l.b16 %v228
        %v261 = vunpack.c.l.b16 %v229
        %v262 = vunpack.c.l.b16 %v230
        %v263 = vunpack.c.l.b16 %v231
        %v264 = vunpack.c.l.b16 %v232
        %v265 = vunpack.c.l.b16 %v233
        %v266 = vunpack.c.l.b16 %v234
        %v267 = vpack.c.b16 %v252, %v251
        %v268 = vpack.c.b16 %v254, %v253
        %v269 = vpack.c.b16 %v256, %v255
        %v270 = vpack.c.b16 %v258, %v257
        %v271 = vpack.c.b16 %v260, %v259
        %v272 = vpack.c.b16 %v262, %v261
        %v273 = vpack.c.b16 %v264, %v263
        %v274 = vpack.c.b16 %v266, %v265
        %283 = vmatprep.subr.bf16.mxu0 0
        %284 = vmatpush1.bf16.msra.mxu0 %v267
        %285 = vmatprep.subr.bf16.mxu0 0
        %286 = vmatpush1.bf16.msra.mxu0 %v268
        %287 = vmatprep.subr.bf16.mxu0 0
        %288 = vmatpush1.bf16.msra.mxu0 %v269
        %289 = vmatprep.subr.bf16.mxu0 0
        %290 = vmatpush1.bf16.msra.mxu0 %v270
        %291 = vmatprep.subr.bf16.mxu0 0
        %292 = vmatpush1.bf16.msra.mxu0 %v271
        %293 = vmatprep.subr.bf16.mxu0 0
        %294 = vmatpush1.bf16.msra.mxu0 %v272
        %295 = vmatprep.subr.bf16.mxu0 0
        %296 = vmatpush1.bf16.msra.mxu0 %v273
        %297 = vmatprep.subr.bf16.mxu0 0
        %298 = vmatpush1.bf16.msra.mxu0 %v274
        %299 = vmatprep.subr.bf16.mxu0 0
        %300 = vmatpush1.bf16.msra.mxu0 0
        %301 = vmatprep.subr.bf16.mxu0 0
        %302 = vmatpush1.bf16.msra.mxu0 0
        %303 = vmatprep.subr.bf16.mxu0 0
        %304 = vmatpush1.bf16.msra.mxu0 0
        %305 = vmatprep.subr.bf16.mxu0 0
        %306 = vmatpush1.bf16.msra.mxu0 0
        %307 = vmatprep.subr.bf16.mxu0 0
        %308 = vmatpush1.bf16.msra.mxu0 0
        %309 = vmatprep.subr.bf16.mxu0 0
        %310 = vmatpush1.bf16.msra.mxu0 0
        %311 = vmatprep.subr.bf16.mxu0 0
        %312 = vmatpush1.bf16.msra.mxu0 0
        %313 = vmatprep.subr.bf16.mxu0 0
        %314 = vmatpush1.bf16.msra.mxu0 0
        %315 = vmatprep.mubr.bf16.mxu0 0
        %316 = vmatmul.mubr.bf16.gmra.mrb[0].mxu0 %v218
        %v317 = vpop.f32.mrb[0].mxu0
        %v318 = vadd.f32 0.0, %v317
        %v319 = vpop.f32.mrb[0].mxu0
        %v320 = vpop.f32.mrb[0].mxu0
        %v321 = vpop.f32.mrb[0].mxu0
        %322 = vdwg.mxu0
        %v323 = vpack.c.bf16 %v318, %v318
        %324 = vst [vmem:[%s216] sm:$0xf] %v323
        %s325 = sand.u32 %s98, 1
        %s326 = scalar_lea.sflag [#allocation4], %s325
        %s327 = sand.u32 %s98, 1
        %s328 = smul.addr %s327, 4
        %s329 = scalar_lea.vmem [#allocation7], %s328
        // Predicated region
        $region37: #{tpu_custom_call.1} parent=27 // pred_check
          %p330 = pneg %p108
        $region38: #{tpu_custom_call.1} parent=27 // pred_check_branch
          %332 = sbr.rel (%p330) target = $region40
        $region39: #{tpu_custom_call.1} parent=27 // pred_region
          %s334 = ssub.s32 64, 64
          %335 = vsyncadd %s326, %s334
          %s336 = smul.addr %s26, 4
          %s337 = sadd.s32 %s27, %s336
          %s338 = smul.addr %s337, 64
          %s339 = scalar_lea.hbm %s2, %s338
          %s341 = sshll.u32 %s329, 4
          %s342 = int_to_ptr.vmem [resolvable:$true] %s341
          %344 = dma.vmem_to_hbm [thread:$0]  %s342, 64, %s339, %s326
        $region40: #{tpu_custom_call.1} parent=27 // pred_fallthru
          _
      $region28: #{tpu_custom_call.1} parent=5 // pred_fallthru
        _
      %p345 = scmp.le.s32.totalorder 2, %s17
      // Predicated region
      $region41: #{tpu_custom_call.1} parent=5 // pred_check
        %p346 = pneg %p345
      $region42: #{tpu_custom_call.1} parent=5 // pred_check_branch
        %348 = sbr.rel (%p346) target = $region44
      $region43: #{tpu_custom_call.1} parent=5 // pred_region
        %s349 = ssub.s32 %s17, 2
        // Predicated region
        $region45: #{tpu_custom_call.1} parent=43 // pred_check
          %p350 = pneg %p114
        $region46: #{tpu_custom_call.1} parent=43 // pred_check_branch
          %352 = sbr.rel (%p350) target = $region48
        $region47: #{tpu_custom_call.1} parent=43 // pred_region
          %s353 = sand.u32 %s99, 1
          %s354 = scalar_lea.sflag [#allocation4], %s353
          %s355 = sand.u32 %s99, 1
          %s356 = smul.addr %s355, 4
          %s357 = scalar_lea.vmem [#allocation7], %s356
          %358 = dma.done %s354, 64
        $region48: #{tpu_custom_call.1} parent=43 // pred_fallthru
          _
      $region44: #{tpu_custom_call.1} parent=5 // pred_fallthru
        _
    $region6: #{tpu_custom_call.1} parent=1 // loop_footer
      %s21 = sadd.s32 1, %s17
    $region7: #{tpu_custom_call.1} parent=1 // loop_footer_branch
      %16 = sbr.rel target = $region3
    $region8: #{tpu_custom_call.1} parent=1 // loop_exit
      _
    %359 = vsyncpa [#allocation3], 1
    %s360 = scalar_lea.sflag [#allocation3], 1
    %361 = vsyncpa %s360, 1
    %362 = vsyncpa [#allocation6], 1
    %s363 = scalar_lea.sflag [#allocation6], 1
    %364 = vsyncpa %s363, 1
    %365 = vsyncpa [#allocation4], 1
    %s366 = scalar_lea.sflag [#allocation4], 1
    %367 = vsyncpa %s366, 1

</llo_original>
